<compile_context>
chip_gen: v7x
topology: tpu7x:2x2x1
jax: 0.10.0
libtpu: 0.0.40
codegen_flags: <defaults>
</compile_context>

<pallas_src>
import functools

import jax
import jax.numpy as jnp
from jax.experimental import pallas as pl
from jax.experimental.pallas import tpu as pltpu


def _round_up(n, m):
    return ((n + m - 1) // m) * m


def sublayer_connection_kernel(x_ref, a2_ref, b2_ref, w_ref, bias_ref, o_ref,
                               *, eps, tile_cols):
    # x_ref: (TM, D) full-hidden-width row tile; w_ref: (D, TN) column tile.
    x = x_ref[...].astype(jnp.float32)                       # (TM, D)
    d = x.shape[-1]

    # --- LayerNorm (torch semantics: unbiased std, eps added to std) ---
    mean = jnp.mean(x, axis=-1, keepdims=True)               # (TM, 1)
    centered = x - mean
    var_unbiased = jnp.sum(centered * centered, axis=-1,
                           keepdims=True) / jnp.float32(d - 1)
    std = jnp.sqrt(var_unbiased)
    # NOTE: approx=True would move this to the EUP, but the eps-on-std
    # semantics make the normalization scale sensitive to reciprocal error,
    # so keep the exact reciprocal (review flagged accuracy validation).
    inv = pl.reciprocal(std + jnp.float32(eps), approx=False)
    normed = (a2_ref[...].astype(jnp.float32) * (centered * inv)
              + b2_ref[...].astype(jnp.float32))             # (TM, D)

    # --- Sublayer: Linear(D, D) column tile on the MXU ---
    # Feed the MXU in W's dtype (bf16 when W is bf16); accumulate in f32.
    y = jnp.dot(normed.astype(w_ref.dtype), w_ref[...],
                preferred_element_type=jnp.float32)          # (TM, TN)
    y = y + bias_ref[...].astype(jnp.float32)

    # --- Dropout (eval mode => identity) + residual on this column tile ---
    # TODO(synk): training-mode dropout (pltpu.prng_random_bits mask) omitted;
    # eval-mode dropout is the identity.
    if tile_cols == d:
        x_cols = x
    else:
        j = pl.program_id(1)
        col0 = pl.multiple_of(j * tile_cols, tile_cols)
        x_cols = x_ref[:, pl.ds(col0, tile_cols)].astype(jnp.float32)
    o_ref[...] = (x_cols + y).astype(o_ref.dtype)


def _pick_col_tile(d, want=512):
    """Largest multiple of 128 that divides D and is <= `want`; else D."""
    if d <= want or d % 128 != 0:
        return d
    for t in range(want - (want % 128), 127, -128):
        if d % t == 0:
            return t
    return d


def sublayer_connection(x, a2, b2, w, bias, *, eps=1e-6, tile_rows=256,
                        tile_cols=None):
    """x: [B, S, D] -> [B, S, D]; w: [D, D] sublayer Linear weight."""
    B, S, D = x.shape
    rows = B * S
    x2 = x.reshape(rows, D)

    # Row tiling: big tiles amortize the ~0.35 us/step grid overhead and feed
    # the MXU full-height pushes; respect bf16's (16, 128) sublane minimum.
    sub = 16 if x.dtype == jnp.bfloat16 else 8
    tile_rows = max(sub, (int(tile_rows) // sub) * sub)
    tile_rows = min(tile_rows, _round_up(rows, sub))
    rows_padded = _round_up(rows, tile_rows)
    if rows_padded != rows:
        # Zero rows are safe: centered == 0 so LayerNorm stays finite.
        x2 = jnp.pad(x2, ((0, rows_padded - rows), (0, 0)))

    # Column tiling of the weight so (D, D) never needs to be resident
    # double-buffered in VMEM at large D (v7x has only 64 MiB VMEM).
    if tile_cols is None:
        tile_cols = _pick_col_tile(D)
    tile_cols = min(int(tile_cols), D)
    if D % tile_cols != 0 or (tile_cols != D and tile_cols % 128 != 0):
        tile_cols = D
    n_row_tiles = rows_padded // tile_rows
    n_col_tiles = D // tile_cols

    a2_2d = a2.reshape(1, D)
    b2_2d = b2.reshape(1, D)
    bias_2d = bias.reshape(1, D)

    kernel = functools.partial(sublayer_connection_kernel, eps=eps,
                               tile_cols=tile_cols)

    x_bytes = jnp.dtype(x.dtype).itemsize
    w_bytes = jnp.dtype(w.dtype).itemsize
    # Double-buffered pipeline footprint + f32 intermediates headroom.
    tile_vmem = (2 * tile_rows * D * x_bytes            # x tile
                 + 2 * tile_rows * tile_cols * x_bytes  # out tile
                 + 2 * D * tile_cols * w_bytes          # W column tile
                 + 2 * (2 * D + tile_cols) * 4          # a_2, b_2, bias
                 + 3 * tile_rows * D * 4)               # f32 intermediates
    vmem_limit = int(min(max(2 * tile_vmem, 32 << 20), 64 << 20))

    cost = pl.CostEstimate(
        flops=int(2 * rows * D * D + 10 * rows * D),
        transcendentals=0,
        bytes_accessed=int(2 * rows * D * x_bytes + D * D * w_bytes
                           + 3 * D * 4),
    )

    out2 = pl.pallas_call(
        kernel,
        out_shape=jax.ShapeDtypeStruct((rows_padded, D), x.dtype),
        grid_spec=pltpu.PrefetchScalarGridSpec(
            num_scalar_prefetch=0,
            grid=(n_row_tiles, n_col_tiles),
            in_specs=[
                pl.BlockSpec((tile_rows, D), lambda i, j: (i, 0)),   # x rows
                pl.BlockSpec((1, D), lambda i, j: (0, 0)),           # a_2
                pl.BlockSpec((1, D), lambda i, j: (0, 0)),           # b_2
                pl.BlockSpec((D, tile_cols), lambda i, j: (0, j)),   # W cols
                pl.BlockSpec((1, tile_cols), lambda i, j: (0, j)),   # bias
            ],
            out_specs=pl.BlockSpec((tile_rows, tile_cols),
                                   lambda i, j: (i, j)),
        ),
        compiler_params=pltpu.CompilerParams(
            dimension_semantics=("parallel", "parallel"),
            vmem_limit_bytes=vmem_limit),
        cost_estimate=cost,
    )(x2, a2_2d, b2_2d, w, bias_2d)

    if rows_padded != rows:
        out2 = out2[:rows]
    return out2.reshape(B, S, D)


def reference(x, a2, b2, w, bias, eps=1e-6):
    """Pure-JAX (f32) reference mirroring the PyTorch forward (eval mode)."""
    xf = x.astype(jnp.float32)
    d = xf.shape[-1]
    mean = jnp.mean(xf, axis=-1, keepdims=True)
    centered = xf - mean
    var_unbiased = jnp.sum(centered * centered, axis=-1,
                           keepdims=True) / (d - 1)
    std = jnp.sqrt(var_unbiased)
    normed = (a2.astype(jnp.float32) * centered / (std + eps)
              + b2.astype(jnp.float32))
    y = normed @ w.astype(jnp.float32) + bias.astype(jnp.float32)
    return (xf + y).astype(x.dtype)


if __name__ == "__main__":
    B, S, D = 2, 8, 128  # batch, seq, hidden (D >= 128 keeps lanes dense)

    key = jax.random.PRNGKey(0)
    kx, kw, kb = jax.random.split(key, 3)

    # LayerNorm params match nn.Parameter(torch.ones/zeros(features)).
    a2 = jnp.ones((D,), dtype=jnp.float32)
    b2 = jnp.zeros((D,), dtype=jnp.float32)

    # Deterministic synthetic sublayer: Linear(D, D).
    x = jax.random.normal(kx, (B, S, D), dtype=jnp.float32)
    w = jax.random.normal(kw, (D, D), dtype=jnp.float32) / jnp.sqrt(D)
    bias = jax.random.normal(kb, (D,), dtype=jnp.float32) * 0.01

    # --- f32 path ---
    out = jax.block_until_ready(sublayer_connection(x, a2, b2, w, bias))
    ref = reference(x, a2, b2, w, bias)
    assert out.shape == (B, S, D)
    assert jnp.allclose(out, ref, atol=2e-3, rtol=2e-3), \
        "f32 mismatch vs reference"

    # --- bf16 I/O + bf16 MXU operands (f32 stats / f32 accumulation inside) ---
    xb = x.astype(jnp.bfloat16)
    wb = w.astype(jnp.bfloat16)
    biasb = bias.astype(jnp.bfloat16)
    outb = jax.block_until_ready(sublayer_connection(xb, a2, b2, wb, biasb))
    refb = reference(xb, a2, b2, wb, biasb)
    assert outb.dtype == jnp.bfloat16
    assert jnp.allclose(outb.astype(jnp.float32), refb.astype(jnp.float32),
                        atol=1e-1, rtol=1e-1), "bf16 mismatch vs reference"

    print("KERNEL_OK")
</pallas_src>

<mosaic_0001>
module attributes {stable_mosaic.version = 11 : i64} {
  func.func @sublayer_connection_kernel(%arg0: i32, %arg1: i32, %arg2: memref<16x128xf32, #tpu.memory_space<vmem>>, %arg3: memref<1x128xf32, #tpu.memory_space<vmem>>, %arg4: memref<1x128xf32, #tpu.memory_space<vmem>>, %arg5: memref<128x128xf32, #tpu.memory_space<vmem>>, %arg6: memref<1x128xf32, #tpu.memory_space<vmem>>, %arg7: memref<16x128xf32, #tpu.memory_space<vmem>>) attributes {dimension_semantics = [#tpu.dimension_semantics<parallel>, #tpu.dimension_semantics<parallel>], iteration_bounds = array<i64: 1, 1>, scalar_prefetch = 0 : i64, scratch_operands = 0 : i64, tpu.core_type = #tpu.core_type<tc>, window_params = [{transform_indices = @transform_0, window_bounds = array<i64: 16, 128>}, {pipeline_mode = #tpu.pipeline_mode<synchronous>, transform_indices = @transform_1, window_bounds = array<i64: 1, 128>}, {pipeline_mode = #tpu.pipeline_mode<synchronous>, transform_indices = @transform_2, window_bounds = array<i64: 1, 128>}, {transform_indices = @transform_3, window_bounds = array<i64: 128, 128>}, {transform_indices = @transform_4, window_bounds = array<i64: 1, 128>}, {transform_indices = @transform_5, window_bounds = array<i64: 16, 128>}]} {
    %c0 = arith.constant 0 : index
    %c0_0 = arith.constant 0 : index
    %0 = vector.load %arg2[%c0, %c0_0] : memref<16x128xf32, #tpu.memory_space<vmem>>, vector<16x128xf32>
    %cst = arith.constant dense<0.000000e+00> : vector<16xf32>
    %1 = vector.multi_reduction <add>, %0, %cst [1] : vector<16x128xf32> to vector<16xf32>
    %2 = vector.shape_cast %1 : vector<16xf32> to vector<16x1xf32>
    %cst_1 = arith.constant 1.280000e+02 : f32
    %3 = vector.broadcast %cst_1 : f32 to vector<16x1xf32>
    %4 = arith.divf %2, %3 : vector<16x1xf32>
    %5 = vector.broadcast %4 : vector<16x1xf32> to vector<16x128xf32>
    %6 = arith.subf %0, %5 : vector<16x128xf32>
    %7 = arith.mulf %6, %6 : vector<16x128xf32>
    %cst_2 = arith.constant dense<0.000000e+00> : vector<16xf32>
    %8 = vector.multi_reduction <add>, %7, %cst_2 [1] : vector<16x128xf32> to vector<16xf32>
    %9 = vector.shape_cast %8 : vector<16xf32> to vector<16x1xf32>
    %cst_3 = arith.constant 1.270000e+02 : f32
    %10 = vector.broadcast %cst_3 : f32 to vector<16x1xf32>
    %11 = arith.divf %9, %10 : vector<16x1xf32>
    %12 = math.sqrt %11 : vector<16x1xf32>
    %cst_4 = arith.constant 9.99999997E-7 : f32
    %13 = vector.broadcast %cst_4 : f32 to vector<16x1xf32>
    %14 = arith.addf %12, %13 : vector<16x1xf32>
    %15 = tpu.reciprocal %14 : vector<16x1xf32> -> vector<16x1xf32>
    %c0_5 = arith.constant 0 : index
    %c0_6 = arith.constant 0 : index
    %16 = vector.load %arg3[%c0_5, %c0_6] : memref<1x128xf32, #tpu.memory_space<vmem>>, vector<1x128xf32>
    %17 = vector.broadcast %15 : vector<16x1xf32> to vector<16x128xf32>
    %18 = arith.mulf %6, %17 : vector<16x128xf32>
    %19 = vector.broadcast %16 : vector<1x128xf32> to vector<16x128xf32>
    %20 = arith.mulf %19, %18 : vector<16x128xf32>
    %c0_7 = arith.constant 0 : index
    %c0_8 = arith.constant 0 : index
    %21 = vector.load %arg4[%c0_7, %c0_8] : memref<1x128xf32, #tpu.memory_space<vmem>>, vector<1x128xf32>
    %22 = vector.broadcast %21 : vector<1x128xf32> to vector<16x128xf32>
    %23 = arith.addf %20, %22 : vector<16x128xf32>
    %c0_9 = arith.constant 0 : index
    %c0_10 = arith.constant 0 : index
    %24 = vector.load %arg5[%c0_9, %c0_10] : memref<128x128xf32, #tpu.memory_space<vmem>>, vector<128x128xf32>
    %cst_11 = arith.constant dense<0.000000e+00> : vector<16x128xf32>
    %25 = tpu.matmul %23, %24, %cst_11 {dimension_numbers = #tpu.dot_dimension_numbers<[1], [0], [0], [1], [0, 0, 1, 1], [], []>} : vector<16x128xf32>, vector<128x128xf32>, vector<16x128xf32> -> vector<16x128xf32>
    %c0_12 = arith.constant 0 : index
    %c0_13 = arith.constant 0 : index
    %26 = vector.load %arg6[%c0_12, %c0_13] : memref<1x128xf32, #tpu.memory_space<vmem>>, vector<1x128xf32>
    %27 = vector.broadcast %26 : vector<1x128xf32> to vector<16x128xf32>
    %28 = arith.addf %25, %27 : vector<16x128xf32>
    %29 = arith.addf %0, %28 : vector<16x128xf32>
    %c0_14 = arith.constant 0 : index
    %c0_15 = arith.constant 0 : index
    %30 = vector.load %arg7[%c0_14, %c0_15] : memref<16x128xf32, #tpu.memory_space<vmem>>, vector<16x128xf32>
    tpu.vector_store %arg7[%c0_14, %c0_15], %29 {strides = array<i32>} : memref<16x128xf32, #tpu.memory_space<vmem>>, vector<16x128xf32>,
    return
  }
  func.func @transform_0(%arg0: i32, %arg1: i32) -> (i32, i32) {
    %c0_i32 = arith.constant 0 : i32
    %c0_i32_0 = arith.constant 0 : i32
    return %arg0, %c0_i32 : i32, i32
  }
  func.func @transform_1(%arg0: i32, %arg1: i32) -> (i32, i32) {
    %c0_i32 = arith.constant 0 : i32
    %c0_i32_0 = arith.constant 0 : i32
    %c0_i32_1 = arith.constant 0 : i32
    return %c0_i32, %c0_i32_0 : i32, i32
  }
  func.func @transform_2(%arg0: i32, %arg1: i32) -> (i32, i32) {
    %c0_i32 = arith.constant 0 : i32
    %c0_i32_0 = arith.constant 0 : i32
    %c0_i32_1 = arith.constant 0 : i32
    return %c0_i32, %c0_i32_0 : i32, i32
  }
  func.func @transform_3(%arg0: i32, %arg1: i32) -> (i32, i32) {
    %c0_i32 = arith.constant 0 : i32
    %c0_i32_0 = arith.constant 0 : i32
    return %c0_i32, %arg1 : i32, i32
  }
  func.func @transform_4(%arg0: i32, %arg1: i32) -> (i32, i32) {
    %c0_i32 = arith.constant 0 : i32
    %c0_i32_0 = arith.constant 0 : i32
    return %c0_i32, %arg1 : i32, i32
  }
  func.func @transform_5(%arg0: i32, %arg1: i32) -> (i32, i32) {
    %c0_i32 = arith.constant 0 : i32
    return %arg0, %arg1 : i32, i32
  }
}

</mosaic_0001>

<llo_original>
// kernel: tpu_custom_call.1
$region0: #{tpu_custom_call.1}
  #allocation0 [shape = 'u32[]', space=smem, size = 0x4, offset = 0x4, fixed_abs, tag = 'smem constant byte address 0x4 - core index']
  #allocation1 [shape = 'u32[144,128]{1,0:T(1,128)}', space=vmem, size = 0x12000, scoped, tag = 'internal scratch']
  %s0 = inlined_call_operand.hbm [shape: f32[16,128], index: 0, kind: input, shape index: {}]
  %s1 = inlined_call_operand.vmem [shape: f32[1,128], index: 1, kind: input, shape index: {}]
  %s2 = inlined_call_operand.vmem [shape: f32[1,128], index: 2, kind: input, shape index: {}]
  %s3 = inlined_call_operand.hbm [shape: f32[128,128], index: 3, kind: input, shape index: {}]
  %s4 = inlined_call_operand.vmem [shape: f32[1,128], index: 4, kind: input, shape index: {}]
  %s5 = inlined_call_operand.hbm [shape: f32[16,128], index: 5, kind: output, shape index: {}]
  %s6 = sld [smem:[#allocation0]]
  $region38: #{tpu_custom_call.1} parent=0
    _
  %s8 = ssub.s32 1, %s6
  %s9 = scalar_select 0, %s8, %s6
  $region1: #{tpu_custom_call.1} parent=0
    #allocation2 [shape = 'u8[8192]{0}', space=vmem, size = 0x2000, scoped, tag = 'input window, operand 0, single buffered']
    #allocation3 [shape = 's32[1]{0}', space=sflag, size = 0x4, scoped, tag = 'scoped memory for tpu_custom_call.1']
    #allocation4 [shape = 's32[1]{0}', space=sflag, size = 0x4, scoped, tag = 'scoped memory for tpu_custom_call.1']
    #allocation5 [shape = 'u8[65536]{0}', space=vmem, size = 0x10000, scoped, tag = 'input window, operand 3, single buffered']
    #allocation6 [shape = 's32[1]{0}', space=sflag, size = 0x4, scoped, tag = 'scoped memory for tpu_custom_call.1']
    #allocation7 [shape = 'u8[8192]{0}', space=vmem, size = 0x2000, scoped, tag = 'output window, operand 0, single buffered']
    %10 = vsyncpa [#allocation3], 0
    %11 = vsyncpa [#allocation6], 0
    %12 = vsyncpa [#allocation4], 0
    // Predicated region
    $region2: #{tpu_custom_call.1} parent=1 // pred_check
      _
    $region3: #{tpu_custom_call.1} parent=1 // pred_check_branch
      %14 = sbr.rel (0) target = $region5
    $region4: #{tpu_custom_call.1} parent=1 // pred_region
      %s16 = ssub.s32 256, 256
      %17 = vsyncadd [#allocation3], %s16
      %s18 = sshll.u32 [#allocation2], 4
      %s19 = int_to_ptr.vmem [resolvable:$true] %s18
      %24 = dma.hbm_to_vmem [thread:$0]  %s0, 256, %s19, [#allocation3], 128, 128, 8
    $region5: #{tpu_custom_call.1} parent=1 // pred_fallthru
      _
    // Predicated region
    $region6: #{tpu_custom_call.1} parent=1 // pred_check
      _
    $region7: #{tpu_custom_call.1} parent=1 // pred_check_branch
      %26 = sbr.rel (0) target = $region9
    $region8: #{tpu_custom_call.1} parent=1 // pred_region
      _
    $region9: #{tpu_custom_call.1} parent=1 // pred_fallthru
      _
    // Predicated region
    $region10: #{tpu_custom_call.1} parent=1 // pred_check
      _
    $region11: #{tpu_custom_call.1} parent=1 // pred_check_branch
      %28 = sbr.rel (0) target = $region13
    $region12: #{tpu_custom_call.1} parent=1 // pred_region
      _
    $region13: #{tpu_custom_call.1} parent=1 // pred_fallthru
      _
    // Predicated region
    $region14: #{tpu_custom_call.1} parent=1 // pred_check
      _
    $region15: #{tpu_custom_call.1} parent=1 // pred_check_branch
      %30 = sbr.rel (0) target = $region17
    $region16: #{tpu_custom_call.1} parent=1 // pred_region
      %s32 = ssub.s32 2048, 2048
      %33 = vsyncadd [#allocation6], %s32
      %s34 = sshll.u32 [#allocation5], 4
      %s35 = int_to_ptr.vmem [resolvable:$true] %s34
      %40 = dma.hbm_to_vmem [thread:$0]  %s3, 2048, %s35, [#allocation6], 128, 128, 8
    $region17: #{tpu_custom_call.1} parent=1 // pred_fallthru
      _
    // Predicated region
    $region18: #{tpu_custom_call.1} parent=1 // pred_check
      _
    $region19: #{tpu_custom_call.1} parent=1 // pred_check_branch
      %42 = sbr.rel (0) target = $region21
    $region20: #{tpu_custom_call.1} parent=1 // pred_region
      _
    $region21: #{tpu_custom_call.1} parent=1 // pred_fallthru
      _
    // Predicated region
    $region22: #{tpu_custom_call.1} parent=1 // pred_check
      _
    $region23: #{tpu_custom_call.1} parent=1 // pred_check_branch
      %44 = sbr.rel (0) target = $region25
    $region24: #{tpu_custom_call.1} parent=1 // pred_region
      %45 = dma.done [#allocation3], 256
    $region25: #{tpu_custom_call.1} parent=1 // pred_fallthru
      _
    // Predicated region
    $region26: #{tpu_custom_call.1} parent=1 // pred_check
      _
    $region27: #{tpu_custom_call.1} parent=1 // pred_check_branch
      %47 = sbr.rel (0) target = $region29
    $region28: #{tpu_custom_call.1} parent=1 // pred_region
      %48 = dma.done [#allocation6], 2048
    $region29: #{tpu_custom_call.1} parent=1 // pred_fallthru
      _
    %v49 = vld [vmem:[#allocation2] sm:$0xff]
    %v50 = vld [vmem:[#allocation2 + $0x8] sm:$0xff]
    %51 = vadd.xlane.f32.xlu0 %v49
    %v52 = vpop.xlane.xlu0 %51
    %53 = vadd.xlane.f32.xlu0 %v50
    %v54 = vpop.xlane.xlu0 %53
    %v55 = vrcp.pop 128.0
    %v56 = vmul.f32 %v52, %v55
    %v57 = vmul.f32 %v54, %v55
    %v58 = vsub.f32 %v49, %v56
    %v59 = vsub.f32 %v50, %v57
    %v60 = vmul.f32 %v58, %v58
    %v61 = vmul.f32 %v59, %v59
    %62 = vadd.xlane.f32.xlu0 %v60
    %v63 = vpop.xlane.xlu0 %62
    %64 = vadd.xlane.f32.xlu0 %v61
    %v65 = vpop.xlane.xlu0 %64
    %v66 = vrcp.pop 127.0
    %v67 = vmul.f32 %v63, %v66
    %v68 = vmul.f32 %v65, %v66
    %v69 = vrsqrt.pop %v67
    %v70 = vmul.f32 %v67, %v69
    %vm71 = vcmp.eq.f32.partialorder %v67, inf
    %v72 = vsel %vm71, %v67, %v70
    %vm73 = vcmp.eq.f32.partialorder %v67, 0.0
    %v74 = vand.u32 %v67, 2147483648
    %v75 = vsel %vm73, %v74, %v72
    %v76 = vrsqrt.pop %v68
    %v77 = vmul.f32 %v68, %v76
    %vm78 = vcmp.eq.f32.partialorder %v68, inf
    %v79 = vsel %vm78, %v68, %v77
    %vm80 = vcmp.eq.f32.partialorder %v68, 0.0
    %v81 = vand.u32 %v68, 2147483648
    %v82 = vsel %vm80, %v81, %v79
    %v83 = vadd.f32 %v75, 1e-06
    %v84 = vadd.f32 %v82, 1e-06
    %v85 = vrcp.pop %v83
    %v86 = vrcp.pop %v84
    %v87 = vld [vmem:[%s1] sm:$0x1]
    %v88 = vmul.f32 %v58, %v85
    %v89 = vmul.f32 %v59, %v86
    %v91 = vlaneseq
    %v92 = vshrl.u32 %v91, 7
    %v93 = vsub.s32 0, %v92
    %v94 = vrot.slane %v87, %v93
    %v96 = vmul.f32 %v94, %v88
    %v97 = vmul.f32 %v94, %v89
    %v98 = vld [vmem:[%s2] sm:$0x1]
    %v100 = vlaneseq
    %v101 = vshrl.u32 %v100, 7
    %v102 = vsub.s32 0, %v101
    %v103 = vrot.slane %v98, %v102
    %v105 = vadd.f32 %v96, %v103
    %v106 = vadd.f32 %v97, %v103
    %v107 = vld [vmem:[#allocation5] sm:$0xff]
    %v108 = vld [vmem:[#allocation5 + $0x8] sm:$0xff]
    %v109 = vld [vmem:[#allocation5 + $0x10] sm:$0xff]
    %v110 = vld [vmem:[#allocation5 + $0x18] sm:$0xff]
    %v111 = vld [vmem:[#allocation5 + $0x20] sm:$0xff]
    %v112 = vld [vmem:[#allocation5 + $0x28] sm:$0xff]
    %v113 = vld [vmem:[#allocation5 + $0x30] sm:$0xff]
    %v114 = vld [vmem:[#allocation5 + $0x38] sm:$0xff]
    %v115 = vld [vmem:[#allocation5 + $0x40] sm:$0xff]
    %v116 = vld [vmem:[#allocation5 + $0x48] sm:$0xff]
    %v117 = vld [vmem:[#allocation5 + $0x50] sm:$0xff]
    %v118 = vld [vmem:[#allocation5 + $0x58] sm:$0xff]
    %v119 = vld [vmem:[#allocation5 + $0x60] sm:$0xff]
    %v120 = vld [vmem:[#allocation5 + $0x68] sm:$0xff]
    %v121 = vld [vmem:[#allocation5 + $0x70] sm:$0xff]
    %v122 = vld [vmem:[#allocation5 + $0x78] sm:$0xff]
    %v123 = vld [vmem:[%s4] sm:$0x1]
    %v125 = vlaneseq
    %v126 = vshrl.u32 %v125, 7
    %v127 = vsub.s32 0, %v126
    %v128 = vrot.slane %v123, %v127
    %130 = vmatprep.subr.mxu0 0.0
    %131 = vmatpush1.msra.mxu0 %v107
    %132 = vmatprep.subr.mxu0 0.0
    %133 = vmatpush1.msra.mxu0 %v108
    %134 = vmatprep.subr.mxu0 0.0
    %135 = vmatpush1.msra.mxu0 %v109
    %136 = vmatprep.subr.mxu0 0.0
    %137 = vmatpush1.msra.mxu0 %v110
    %138 = vmatprep.subr.mxu0 0.0
    %139 = vmatpush1.msra.mxu0 %v111
    %140 = vmatprep.subr.mxu0 0.0
    %141 = vmatpush1.msra.mxu0 %v112
    %142 = vmatprep.subr.mxu0 0.0
    %143 = vmatpush1.msra.mxu0 %v113
    %144 = vmatprep.subr.mxu0 0.0
    %145 = vmatpush1.msra.mxu0 %v114
    %146 = vmatprep.subr.mxu0 0.0
    %147 = vmatpush1.msra.mxu0 %v115
    %148 = vmatprep.subr.mxu0 0.0
    %149 = vmatpush1.msra.mxu0 %v116
    %150 = vmatprep.subr.mxu0 0.0
    %151 = vmatpush1.msra.mxu0 %v117
    %152 = vmatprep.subr.mxu0 0.0
    %153 = vmatpush1.msra.mxu0 %v118
    %154 = vmatprep.subr.mxu0 0.0
    %155 = vmatpush1.msra.mxu0 %v119
    %156 = vmatprep.subr.mxu0 0.0
    %157 = vmatpush1.msra.mxu0 %v120
    %158 = vmatprep.subr.mxu0 0.0
    %159 = vmatpush1.msra.mxu0 %v121
    %160 = vmatprep.subr.mxu0 0.0
    %161 = vmatpush1.msra.mxu0 %v122
    %162 = vmatprep.subr.mxu0 0.0
    %163 = vmatpush1.msra.mxu0 0.0
    %164 = vmatprep.subr.mxu0 0.0
    %165 = vmatpush1.msra.mxu0 0.0
    %166 = vmatprep.subr.mxu0 0.0
    %167 = vmatpush1.msra.mxu0 0.0
    %168 = vmatprep.subr.mxu0 0.0
    %169 = vmatpush1.msra.mxu0 0.0
    %170 = vmatprep.subr.mxu0 0.0
    %171 = vmatpush1.msra.mxu0 0.0
    %172 = vmatprep.subr.mxu0 0.0
    %173 = vmatpush1.msra.mxu0 0.0
    %174 = vmatprep.subr.mxu0 0.0
    %175 = vmatpush1.msra.mxu0 0.0
    %176 = vmatprep.subr.mxu0 0.0
    %177 = vmatpush1.msra.mxu0 0.0
    %178 = vmatprep.subr.mxu0 0.0
    %179 = vmatpush1.msra.mxu0 0.0
    %180 = vmatprep.subr.mxu0 0.0
    %181 = vmatpush1.msra.mxu0 0.0
    %182 = vmatprep.subr.mxu0 0.0
    %183 = vmatpush1.msra.mxu0 0.0
    %184 = vmatprep.subr.mxu0 0.0
    %185 = vmatpush1.msra.mxu0 0.0
    %186 = vmatprep.subr.mxu0 0.0
    %187 = vmatpush1.msra.mxu0 0.0
    %188 = vmatprep.subr.mxu0 0.0
    %189 = vmatpush1.msra.mxu0 0.0
    %190 = vmatprep.subr.mxu0 0.0
    %191 = vmatpush1.msra.mxu0 0.0
    %192 = vmatprep.subr.mxu0 0.0
    %193 = vmatpush1.msra.mxu0 0.0
    %194 = vmatprep.mubr.f32.mxu0 0.0
    %195 = vmatmul.mubr.f32.gmra.mrb[0].mxu0 %v105
    %v196 = vpop.f32.mrb[0].mxu0
    %v197 = vadd.f32 %v128, %v196
    %v198 = vpop.f32.mrb[0].mxu0
    %199 = vmatprep.mubr.f32.mxu0 0.0
    %200 = vmatmul.mubr.f32.gmra.mrb[0].mxu0 %v106
    %v201 = vpop.f32.mrb[0].mxu0
    %v202 = vadd.f32 %v128, %v201
    %v203 = vpop.f32.mrb[0].mxu0
    %204 = vdwg.mxu0
    %v205 = vadd.f32 %v49, %v197
    %v206 = vadd.f32 %v50, %v202
    %207 = vst [vmem:[#allocation7] sm:$0xff] %v205
    %208 = vst [vmem:[#allocation7 + $0x8] sm:$0xff] %v206
    // Predicated region
    $region30: #{tpu_custom_call.1} parent=1 // pred_check
      _
    $region31: #{tpu_custom_call.1} parent=1 // pred_check_branch
      %210 = sbr.rel (0) target = $region33
    $region32: #{tpu_custom_call.1} parent=1 // pred_region
      %s212 = ssub.s32 256, 256
      %213 = vsyncadd [#allocation4], %s212
      %s214 = sshll.u32 [#allocation7], 4
      %s215 = int_to_ptr.vmem [resolvable:$true] %s214
      %220 = dma.vmem_to_hbm [thread:$0]  %s215, 256, %s5, [#allocation4], 128, 128, 8
    $region33: #{tpu_custom_call.1} parent=1 // pred_fallthru
      _
    // Predicated region
    $region34: #{tpu_custom_call.1} parent=1 // pred_check
      _
    $region35: #{tpu_custom_call.1} parent=1 // pred_check_branch
      %222 = sbr.rel (0) target = $region37
    $region36: #{tpu_custom_call.1} parent=1 // pred_region
      %223 = dma.done [#allocation4], 256
    $region37: #{tpu_custom_call.1} parent=1 // pred_fallthru
      _
    %224 = vsyncpa [#allocation3], 1
    %225 = vsyncpa [#allocation6], 1
    %226 = vsyncpa [#allocation4], 1

</llo_original>
